<compile_context>
chip_gen: v7x
topology: tpu7x:2x2x1
jax: 0.10.0
libtpu: 0.0.40
codegen_flags: <defaults>
</compile_context>

<pallas_src>
import functools

import jax
import jax.numpy as jnp
from jax.experimental import pallas as pl
from jax.experimental.pallas import tpu as pltpu

LEAKY_SLOPE = 0.01
BN_EPS = 1e-5
_MIB = 1024 * 1024


def _round_up(x, m):
    return ((x + m - 1) // m) * m


def _choose_feature_tile(out_size):
    """Pick the output-feature tile width TN and the padded feature count."""
    if out_size <= 128:
        # Sub-128 feature counts: one full-width block (no padding, no
        # post-slice HBM copy) beats padding to 128 and slicing afterwards.
        return out_size, out_size
    if out_size >= 512 and out_size % 256 == 0:
        # Fill the 256-wide MXU (v6e/v7x) while keeping >= 2 grid steps so the
        # "parallel" axis can still be split across v7x's two TensorCores.
        return 256, out_size
    return 128, _round_up(out_size, 128)


def _fused_vmem_estimate(batch, in_size, tn, x_itemsize, w_itemsize):
    """Rough VMEM footprint of the fused (whole-batch-resident) path."""
    return (2 * batch * in_size * x_itemsize   # X block (double-buffered)
            + 2 * in_size * tn * w_itemsize    # W feature tile
            + 2 * batch * tn * 4               # output tile
            + 6 * 2 * tn * 4)                  # bias / gamma / beta rows


def _vmem_limit(estimate_bytes):
    """Scoped-VMEM limit: >= 32 MiB, <= 64 MiB (v7x per-TC physical)."""
    return int(min(max(2 * estimate_bytes, 32 * _MIB), 64 * _MIB))


# ---------------------------------------------------------------------------
# Parameter preparation (hoisted out of the forward pass).
# ---------------------------------------------------------------------------
def init_block_params(w, bias, gamma=None, beta=None, *,
                      matmul_dtype=jnp.float32):
    """Prepare padded / transposed parameters once at init time.

    w: (out, in) PyTorch-layout weight.  bias / gamma / beta: (out,).
    """
    out_size, in_size = w.shape
    if gamma is None:
        gamma = jnp.ones((out_size,), jnp.float32)
    if beta is None:
        beta = jnp.zeros((out_size,), jnp.float32)
    tn, out_pad = _choose_feature_tile(out_size)
    pad = out_pad - out_size
    w_t = jnp.transpose(w.astype(jnp.float32))                       # (in, out)
    return dict(
        w=jnp.pad(w_t, ((0, 0), (0, pad))).astype(matmul_dtype),
        bias=jnp.pad(bias.reshape(1, -1).astype(jnp.float32), ((0, 0), (0, pad))),
        gamma=jnp.pad(gamma.reshape(1, -1).astype(jnp.float32), ((0, 0), (0, pad)),
                      constant_values=1.0),
        beta=jnp.pad(beta.reshape(1, -1).astype(jnp.float32), ((0, 0), (0, pad))),
        in_size=in_size, out_size=out_size, out_pad=out_pad, tn=tn)


# ---------------------------------------------------------------------------
# Path A: fused single-kernel forward (whole batch resident per feature tile).
# ---------------------------------------------------------------------------
def _fused_block_kernel(x_ref, w_ref, b_ref, gamma_ref, beta_ref, o_ref, *,
                        inv_n):
    # Linear (MXU, f32 accumulation).  Operands may be bf16.
    x = x_ref[...].astype(w_ref.dtype)
    y = jnp.dot(x, w_ref[...], preferred_element_type=jnp.float32) + b_ref[...]
    # LeakyReLU: slope in (0,1) => max(y, slope*y) is exact (2 VALU ops).
    y = jnp.maximum(y, LEAKY_SLOPE * y)
    # BatchNorm1d training-mode statistics (biased variance), two-pass centered
    # form: y is already resident, so this avoids E[y^2]-mean^2 cancellation.
    mean = jnp.sum(y, axis=0, keepdims=True) * inv_n
    d = y - mean
    var = jnp.sum(d * d, axis=0, keepdims=True) * inv_n
    scale = gamma_ref[...] * jax.lax.rsqrt(var + BN_EPS)
    o_ref[...] = (d * scale + beta_ref[...]).astype(o_ref.dtype)


def _forward_fused(x, params, vmem_estimate):
    batch, in_size = x.shape
    tn, out_pad, out_size = params["tn"], params["out_pad"], params["out_size"]
    num_tiles = out_pad // tn
    kernel = functools.partial(_fused_block_kernel, inv_n=1.0 / batch)
    out = pl.pallas_call(
        kernel,
        out_shape=jax.ShapeDtypeStruct((batch, out_pad), jnp.float32),
        grid=(num_tiles,),
        in_specs=[
            # Full-array first dims are always legal block dims -> no batch
            # padding and no row masking needed.
            pl.BlockSpec((batch, in_size), lambda j: (0, 0)),   # X (resident)
            pl.BlockSpec((in_size, tn), lambda j: (0, j)),      # W tile
            pl.BlockSpec((1, tn), lambda j: (0, j)),            # bias
            pl.BlockSpec((1, tn), lambda j: (0, j)),            # gamma
            pl.BlockSpec((1, tn), lambda j: (0, j)),            # beta
        ],
        out_specs=pl.BlockSpec((batch, tn), lambda j: (0, j)),
        compiler_params=pltpu.CompilerParams(
            dimension_semantics=("parallel",),
            vmem_limit_bytes=_vmem_limit(vmem_estimate)),
    )(x, params["w"], params["bias"], params["gamma"], params["beta"])
    if out_pad == out_size:
        return out
    return out[:, :out_size]


# ---------------------------------------------------------------------------
# Path B: batch-tiled two-kernel forward for large batches (VMEM scaling path).
# ---------------------------------------------------------------------------
def _linear_stats_kernel(x_ref, w_ref, b_ref, y_ref, s1_ref, s2_ref,
                         s1_acc, s2_acc, *, n_valid, tb, has_pad):
    bi = pl.program_id(1)

    @pl.when(bi == 0)
    def _():
        s1_acc[...] = jnp.zeros_like(s1_acc)
        s2_acc[...] = jnp.zeros_like(s2_acc)

    x = x_ref[...].astype(w_ref.dtype)
    y = jnp.dot(x, w_ref[...], preferred_element_type=jnp.float32) + b_ref[...]
    y = jnp.maximum(y, LEAKY_SLOPE * y)
    y_ref[...] = y

    if has_pad:
        # Mask zero-padded batch rows out of the statistics.
        row = bi * tb + jax.lax.broadcasted_iota(jnp.int32, y.shape, 0)
        y_stat = jnp.where(row < n_valid, y, 0.0)
    else:
        y_stat = y
    # One-pass sums here (a centered second pass over HBM-resident y would cost
    # a full extra read of y); f32 accumulation keeps cancellation negligible
    # for activation-scale data.
    s1_acc[...] += jnp.sum(y_stat, axis=0, keepdims=True)
    s2_acc[...] += jnp.sum(y_stat * y_stat, axis=0, keepdims=True)

    @pl.when(bi == pl.num_programs(1) - 1)
    def _():
        s1_ref[...] = s1_acc[...]
        s2_ref[...] = s2_acc[...]


def _affine_kernel(y_ref, scale_ref, shift_ref, o_ref):
    o_ref[...] = (y_ref[...] * scale_ref[...] + shift_ref[...]).astype(o_ref.dtype)


def _forward_tiled(x, params, batch_tile):
    batch, in_size = x.shape
    tn, out_pad, out_size = params["tn"], params["out_pad"], params["out_size"]
    tb = min(batch_tile, _round_up(batch, 8))
    assert tb % 8 == 0, "batch_tile must be a multiple of 8"
    b_pad = _round_up(batch, tb)
    if b_pad != batch:
        x = jnp.pad(x, ((0, b_pad - batch), (0, 0)))
    n_ft = out_pad // tn
    n_bt = b_pad // tb

    est = (2 * tb * in_size * x.dtype.itemsize
           + 2 * in_size * tn * params["w"].dtype.itemsize
           + 2 * tb * tn * 4 + 8 * tn * 4)
    kernel = functools.partial(_linear_stats_kernel, n_valid=batch, tb=tb,
                               has_pad=(b_pad != batch))
    y, s1, s2 = pl.pallas_call(
        kernel,
        out_shape=(jax.ShapeDtypeStruct((b_pad, out_pad), jnp.float32),
                   jax.ShapeDtypeStruct((1, out_pad), jnp.float32),
                   jax.ShapeDtypeStruct((1, out_pad), jnp.float32)),
        grid=(n_ft, n_bt),
        in_specs=[
            pl.BlockSpec((tb, in_size), lambda j, b: (b, 0)),
            pl.BlockSpec((in_size, tn), lambda j, b: (0, j)),
            pl.BlockSpec((1, tn), lambda j, b: (0, j)),
        ],
        out_specs=(
            pl.BlockSpec((tb, tn), lambda j, b: (b, j)),
            pl.BlockSpec((1, tn), lambda j, b: (0, j)),
            pl.BlockSpec((1, tn), lambda j, b: (0, j)),
        ),
        scratch_shapes=[pltpu.VMEM((1, tn), jnp.float32),
                        pltpu.VMEM((1, tn), jnp.float32)],
        compiler_params=pltpu.CompilerParams(
            dimension_semantics=("parallel", "arbitrary"),
            vmem_limit_bytes=_vmem_limit(est)),
    )(x, params["w"], params["bias"])

    # Tiny (1, OUT_pad) math: fold BN statistics into a single scale/shift row.
    inv_n = 1.0 / batch
    mean = s1 * inv_n
    var = jnp.maximum(s2 * inv_n - mean * mean, 0.0)
    scale = params["gamma"] * jax.lax.rsqrt(var + BN_EPS)
    shift = params["beta"] - mean * scale

    out = pl.pallas_call(
        _affine_kernel,
        out_shape=jax.ShapeDtypeStruct((b_pad, out_pad), jnp.float32),
        grid=(n_ft, n_bt),
        in_specs=[
            pl.BlockSpec((tb, tn), lambda j, b: (b, j)),
            pl.BlockSpec((1, tn), lambda j, b: (0, j)),
            pl.BlockSpec((1, tn), lambda j, b: (0, j)),
        ],
        out_specs=pl.BlockSpec((tb, tn), lambda j, b: (b, j)),
        compiler_params=pltpu.CompilerParams(
            dimension_semantics=("parallel", "parallel")),
    )(y, scale, shift)
    return out[:batch, :out_size]


# ---------------------------------------------------------------------------
# Public forward.
# ---------------------------------------------------------------------------
def block_forward(x, params, *, vmem_budget_bytes=24 * _MIB, batch_tile=256):
    """Forward of Block: Linear -> LeakyReLU -> BatchNorm1d (training mode)."""
    batch, in_size = x.shape
    assert in_size == params["in_size"]
    est = _fused_vmem_estimate(batch, in_size, params["tn"],
                               x.dtype.itemsize, params["w"].dtype.itemsize)
    if est <= vmem_budget_bytes:
        return _forward_fused(x, params, est)
    return _forward_tiled(x, params, batch_tile)


def block_forward_ref(x, w, bias, gamma, beta):
    """Pure-JAX reference (PyTorch training-mode BatchNorm1d, fresh module)."""
    y = x @ w.T + bias[None, :]
    y = jnp.where(y > 0, y, LEAKY_SLOPE * y)
    mean = jnp.mean(y, axis=0, keepdims=True)
    var = jnp.mean((y - mean) ** 2, axis=0, keepdims=True)
    return (y - mean) / jnp.sqrt(var + BN_EPS) * gamma[None, :] + beta[None, :]


# ---------------------------------------------------------------------------
# Demo / self-test.
# ---------------------------------------------------------------------------
def _make_case(key, batch, in_size, out_size):
    kx, kw, kb = jax.random.split(key, 3)
    bound = 1.0 / (in_size ** 0.5)
    w = jax.random.uniform(kw, (out_size, in_size), jnp.float32,
                           minval=-bound, maxval=bound)     # PyTorch (out, in)
    bias = jax.random.uniform(kb, (out_size,), jnp.float32,
                              minval=-bound, maxval=bound)
    gamma = jnp.ones((out_size,), jnp.float32)
    beta = jnp.zeros((out_size,), jnp.float32)
    x = jax.random.normal(kx, (batch, in_size), jnp.float32)
    return x, w, bias, gamma, beta


if __name__ == "__main__":
    k1, k2 = jax.random.split(jax.random.PRNGKey(0))

    # Case 1: fused single-kernel path; OUT < 128 -> full-width tile, no pad.
    x, w, bias, gamma, beta = _make_case(k1, 8, 32, 64)
    params = init_block_params(w, bias, gamma, beta)
    out = jax.block_until_ready(block_forward(x, params))
    ref = block_forward_ref(x, w, bias, gamma, beta)
    assert out.shape == (8, 64)
    assert jnp.allclose(out, ref, atol=2e-4, rtol=2e-4), "fused f32 mismatch"

    # Case 2: bf16 matmul operands (MXU-native), f32 accumulation + BN math.
    params_bf16 = init_block_params(w, bias, gamma, beta,
                                    matmul_dtype=jnp.bfloat16)
    out_bf16 = jax.block_until_ready(block_forward(x, params_bf16))
    assert jnp.allclose(out_bf16, ref, atol=5e-2, rtol=5e-2), "bf16 mismatch"

    # Case 3: batch-tiled scaling path (forced), with feature padding
    # (OUT=160 -> 256) and padded-row masking (B=20 -> 32 with TB=16).
    x3, w3, b3, g3, be3 = _make_case(k2, 20, 32, 160)
    params3 = init_block_params(w3, b3, g3, be3)
    out3 = jax.block_until_ready(
        block_forward(x3, params3, vmem_budget_bytes=0, batch_tile=16))
    ref3 = block_forward_ref(x3, w3, b3, g3, be3)
    assert out3.shape == (20, 160)
    assert jnp.allclose(out3, ref3, atol=5e-4, rtol=5e-4), "tiled path mismatch"

    print("KERNEL_OK")
</pallas_src>

<mosaic_0001>
module attributes {stable_mosaic.version = 11 : i64} {
  func.func @_fused_block_kernel(%arg0: i32, %arg1: memref<8x32xf32, #tpu.memory_space<vmem>>, %arg2: memref<32x64xf32, #tpu.memory_space<vmem>>, %arg3: memref<1x64xf32, #tpu.memory_space<vmem>>, %arg4: memref<1x64xf32, #tpu.memory_space<vmem>>, %arg5: memref<1x64xf32, #tpu.memory_space<vmem>>, %arg6: memref<8x64xf32, #tpu.memory_space<vmem>>) attributes {dimension_semantics = [#tpu.dimension_semantics<parallel>], iteration_bounds = array<i64: 1>, scalar_prefetch = 0 : i64, scratch_operands = 0 : i64, tpu.core_type = #tpu.core_type<tc>, window_params = [{pipeline_mode = #tpu.pipeline_mode<synchronous>, transform_indices = @transform_0, window_bounds = array<i64: 8, 32>}, {transform_indices = @transform_1, window_bounds = array<i64: 32, 64>}, {transform_indices = @transform_2, window_bounds = array<i64: 1, 64>}, {transform_indices = @transform_3, window_bounds = array<i64: 1, 64>}, {transform_indices = @transform_4, window_bounds = array<i64: 1, 64>}, {transform_indices = @transform_5, window_bounds = array<i64: 8, 64>}]} {
    %c0 = arith.constant 0 : index
    %c0_0 = arith.constant 0 : index
    %0 = vector.load %arg1[%c0, %c0_0] : memref<8x32xf32, #tpu.memory_space<vmem>>, vector<8x32xf32>
    %c0_1 = arith.constant 0 : index
    %c0_2 = arith.constant 0 : index
    %1 = vector.load %arg2[%c0_1, %c0_2] : memref<32x64xf32, #tpu.memory_space<vmem>>, vector<32x64xf32>
    %cst = arith.constant dense<0.000000e+00> : vector<8x64xf32>
    %2 = tpu.matmul %0, %1, %cst {dimension_numbers = #tpu.dot_dimension_numbers<[1], [0], [0], [1], [0, 0, 1, 1], [], []>} : vector<8x32xf32>, vector<32x64xf32>, vector<8x64xf32> -> vector<8x64xf32>
    %c0_3 = arith.constant 0 : index
    %c0_4 = arith.constant 0 : index
    %3 = vector.load %arg3[%c0_3, %c0_4] : memref<1x64xf32, #tpu.memory_space<vmem>>, vector<1x64xf32>
    %4 = vector.broadcast %3 : vector<1x64xf32> to vector<8x64xf32>
    %5 = arith.addf %2, %4 : vector<8x64xf32>
    %cst_5 = arith.constant 0.00999999977 : f32
    %6 = vector.broadcast %cst_5 : f32 to vector<8x64xf32>
    %7 = arith.mulf %6, %5 : vector<8x64xf32>
    %8 = arith.maximumf %5, %7 : vector<8x64xf32>
    %cst_6 = arith.constant dense<0.000000e+00> : vector<64xf32>
    %9 = vector.multi_reduction <add>, %8, %cst_6 [0] : vector<8x64xf32> to vector<64xf32>
    %10 = vector.shape_cast %9 : vector<64xf32> to vector<1x64xf32>
    %cst_7 = arith.constant 1.250000e-01 : f32
    %11 = vector.broadcast %cst_7 : f32 to vector<1x64xf32>
    %12 = arith.mulf %10, %11 : vector<1x64xf32>
    %13 = vector.broadcast %12 : vector<1x64xf32> to vector<8x64xf32>
    %14 = arith.subf %8, %13 : vector<8x64xf32>
    %15 = arith.mulf %14, %14 : vector<8x64xf32>
    %cst_8 = arith.constant dense<0.000000e+00> : vector<64xf32>
    %16 = vector.multi_reduction <add>, %15, %cst_8 [0] : vector<8x64xf32> to vector<64xf32>
    %17 = vector.shape_cast %16 : vector<64xf32> to vector<1x64xf32>
    %cst_9 = arith.constant 1.250000e-01 : f32
    %18 = vector.broadcast %cst_9 : f32 to vector<1x64xf32>
    %19 = arith.mulf %17, %18 : vector<1x64xf32>
    %c0_10 = arith.constant 0 : index
    %c0_11 = arith.constant 0 : index
    %20 = vector.load %arg4[%c0_10, %c0_11] : memref<1x64xf32, #tpu.memory_space<vmem>>, vector<1x64xf32>
    %cst_12 = arith.constant 9.99999974E-6 : f32
    %21 = vector.broadcast %cst_12 : f32 to vector<1x64xf32>
    %22 = arith.addf %19, %21 : vector<1x64xf32>
    %23 = math.rsqrt %22 : vector<1x64xf32>
    %24 = arith.mulf %20, %23 : vector<1x64xf32>
    %25 = vector.broadcast %24 : vector<1x64xf32> to vector<8x64xf32>
    %26 = arith.mulf %14, %25 : vector<8x64xf32>
    %c0_13 = arith.constant 0 : index
    %c0_14 = arith.constant 0 : index
    %27 = vector.load %arg5[%c0_13, %c0_14] : memref<1x64xf32, #tpu.memory_space<vmem>>, vector<1x64xf32>
    %28 = vector.broadcast %27 : vector<1x64xf32> to vector<8x64xf32>
    %29 = arith.addf %26, %28 : vector<8x64xf32>
    %c0_15 = arith.constant 0 : index
    %c0_16 = arith.constant 0 : index
    %30 = vector.load %arg6[%c0_15, %c0_16] : memref<8x64xf32, #tpu.memory_space<vmem>>, vector<8x64xf32>
    tpu.vector_store %arg6[%c0_15, %c0_16], %29 {strides = array<i32>} : memref<8x64xf32, #tpu.memory_space<vmem>>, vector<8x64xf32>,
    return
  }
  func.func @transform_0(%arg0: i32) -> (i32, i32) {
    %c0_i32 = arith.constant 0 : i32
    %c0_i32_0 = arith.constant 0 : i32
    %c0_i32_1 = arith.constant 0 : i32
    return %c0_i32, %c0_i32_0 : i32, i32
  }
  func.func @transform_1(%arg0: i32) -> (i32, i32) {
    %c0_i32 = arith.constant 0 : i32
    %c0_i32_0 = arith.constant 0 : i32
    return %c0_i32, %arg0 : i32, i32
  }
  func.func @transform_2(%arg0: i32) -> (i32, i32) {
    %c0_i32 = arith.constant 0 : i32
    %c0_i32_0 = arith.constant 0 : i32
    return %c0_i32, %arg0 : i32, i32
  }
  func.func @transform_3(%arg0: i32) -> (i32, i32) {
    %c0_i32 = arith.constant 0 : i32
    %c0_i32_0 = arith.constant 0 : i32
    return %c0_i32, %arg0 : i32, i32
  }
  func.func @transform_4(%arg0: i32) -> (i32, i32) {
    %c0_i32 = arith.constant 0 : i32
    %c0_i32_0 = arith.constant 0 : i32
    return %c0_i32, %arg0 : i32, i32
  }
  func.func @transform_5(%arg0: i32) -> (i32, i32) {
    %c0_i32 = arith.constant 0 : i32
    %c0_i32_0 = arith.constant 0 : i32
    return %c0_i32, %arg0 : i32, i32
  }
}

</mosaic_0001>

<llo_original>
// kernel: tpu_custom_call.1
$region0: #{tpu_custom_call.1}
  #allocation0 [shape = 'u32[]', space=smem, size = 0x4, offset = 0x4, fixed_abs, tag = 'smem constant byte address 0x4 - core index']
  #allocation1 [shape = 'u32[144,128]{1,0:T(1,128)}', space=vmem, size = 0x12000, scoped, tag = 'internal scratch']
  %s0 = inlined_call_operand.hbm [shape: f32[8,32], index: 0, kind: input, shape index: {}]
  %s1 = inlined_call_operand.hbm [shape: f32[32,64], index: 1, kind: input, shape index: {}]
  %s2 = inlined_call_operand.vmem [shape: f32[1,64], index: 2, kind: input, shape index: {}]
  %s3 = inlined_call_operand.vmem [shape: f32[1,64], index: 3, kind: input, shape index: {}]
  %s4 = inlined_call_operand.vmem [shape: f32[1,64], index: 4, kind: input, shape index: {}]
  %s5 = inlined_call_operand.hbm [shape: f32[8,64], index: 5, kind: output, shape index: {}]
  %s6 = sld [smem:[#allocation0]]
  $region38: #{tpu_custom_call.1} parent=0
    _
  %s8 = ssub.s32 1, %s6
  %s9 = scalar_select 0, %s8, %s6
  $region1: #{tpu_custom_call.1} parent=0
    #allocation2 [shape = 'u8[4096]{0}', space=vmem, size = 0x1000, scoped, tag = 'input window, operand 0, single buffered']
    #allocation3 [shape = 's32[1]{0}', space=sflag, size = 0x4, scoped, tag = 'scoped memory for tpu_custom_call.1']
    #allocation4 [shape = 's32[1]{0}', space=sflag, size = 0x4, scoped, tag = 'scoped memory for tpu_custom_call.1']
    #allocation5 [shape = 'u8[16384]{0}', space=vmem, size = 0x4000, scoped, tag = 'input window, operand 1, single buffered']
    #allocation6 [shape = 's32[1]{0}', space=sflag, size = 0x4, scoped, tag = 'scoped memory for tpu_custom_call.1']
    #allocation7 [shape = 'u8[4096]{0}', space=vmem, size = 0x1000, scoped, tag = 'output window, operand 0, single buffered']
    %10 = vsyncpa [#allocation3], 0
    %11 = vsyncpa [#allocation6], 0
    %12 = vsyncpa [#allocation4], 0
    // Predicated region
    $region2: #{tpu_custom_call.1} parent=1 // pred_check
      _
    $region3: #{tpu_custom_call.1} parent=1 // pred_check_branch
      %14 = sbr.rel (0) target = $region5
    $region4: #{tpu_custom_call.1} parent=1 // pred_region
      %s16 = ssub.s32 128, 128
      %17 = vsyncadd [#allocation3], %s16
      %s19 = sshll.u32 [#allocation2], 4
      %s20 = int_to_ptr.vmem [resolvable:$true] %s19
      %22 = dma.hbm_to_vmem [thread:$0]  %s0, 128, %s20, [#allocation3]
    $region5: #{tpu_custom_call.1} parent=1 // pred_fallthru
      _
    // Predicated region
    $region6: #{tpu_custom_call.1} parent=1 // pred_check
      _
    $region7: #{tpu_custom_call.1} parent=1 // pred_check_branch
      %24 = sbr.rel (0) target = $region9
    $region8: #{tpu_custom_call.1} parent=1 // pred_region
      %s26 = ssub.s32 512, 512
      %27 = vsyncadd [#allocation6], %s26
      %s28 = sshll.u32 [#allocation5], 4
      %s29 = int_to_ptr.vmem [resolvable:$true] %s28
      %34 = dma.hbm_to_vmem [thread:$0]  %s1, 512, %s29, [#allocation6], 128, 128, 8
    $region9: #{tpu_custom_call.1} parent=1 // pred_fallthru
      _
    // Predicated region
    $region10: #{tpu_custom_call.1} parent=1 // pred_check
      _
    $region11: #{tpu_custom_call.1} parent=1 // pred_check_branch
      %36 = sbr.rel (0) target = $region13
    $region12: #{tpu_custom_call.1} parent=1 // pred_region
      _
    $region13: #{tpu_custom_call.1} parent=1 // pred_fallthru
      _
    // Predicated region
    $region14: #{tpu_custom_call.1} parent=1 // pred_check
      _
    $region15: #{tpu_custom_call.1} parent=1 // pred_check_branch
      %38 = sbr.rel (0) target = $region17
    $region16: #{tpu_custom_call.1} parent=1 // pred_region
      _
    $region17: #{tpu_custom_call.1} parent=1 // pred_fallthru
      _
    // Predicated region
    $region18: #{tpu_custom_call.1} parent=1 // pred_check
      _
    $region19: #{tpu_custom_call.1} parent=1 // pred_check_branch
      %40 = sbr.rel (0) target = $region21
    $region20: #{tpu_custom_call.1} parent=1 // pred_region
      _
    $region21: #{tpu_custom_call.1} parent=1 // pred_fallthru
      _
    // Predicated region
    $region22: #{tpu_custom_call.1} parent=1 // pred_check
      _
    $region23: #{tpu_custom_call.1} parent=1 // pred_check_branch
      %42 = sbr.rel (0) target = $region25
    $region24: #{tpu_custom_call.1} parent=1 // pred_region
      %43 = dma.done [#allocation3], 128
    $region25: #{tpu_custom_call.1} parent=1 // pred_fallthru
      _
    // Predicated region
    $region26: #{tpu_custom_call.1} parent=1 // pred_check
      _
    $region27: #{tpu_custom_call.1} parent=1 // pred_check_branch
      %45 = sbr.rel (0) target = $region29
    $region28: #{tpu_custom_call.1} parent=1 // pred_region
      %46 = dma.done [#allocation6], 512
    $region29: #{tpu_custom_call.1} parent=1 // pred_fallthru
      _
    %v47 = vld [vmem:[#allocation2] sm:$0xff]
    %v48 = vld [vmem:[#allocation5] sm:$0xff]
    %v49 = vld [vmem:[#allocation5 + $0x8] sm:$0xff]
    %v50 = vld [vmem:[#allocation5 + $0x10] sm:$0xff]
    %v51 = vld [vmem:[#allocation5 + $0x18] sm:$0xff]
    %v52 = vld [vmem:[%s2] sm:$0x1]
    %v54 = vlaneseq
    %v55 = vshrl.u32 %v54, 7
    %v56 = vsub.s32 0, %v55
    %v57 = vrot.slane %v52, %v56
    %vm59 = vcmask 261120
    %v61 = vsel %vm59, %v47, 0
    %63 = vmatprep.subr.mxu0 0.0
    %64 = vmatpush1.msra.mxu0 %v48
    %65 = vmatprep.subr.mxu0 0.0
    %66 = vmatpush1.msra.mxu0 %v49
    %67 = vmatprep.subr.mxu0 0.0
    %68 = vmatpush1.msra.mxu0 %v50
    %69 = vmatprep.subr.mxu0 0.0
    %70 = vmatpush1.msra.mxu0 %v51
    %71 = vmatprep.subr.mxu0 0.0
    %72 = vmatpush1.msra.mxu0 0.0
    %73 = vmatprep.subr.mxu0 0.0
    %74 = vmatpush1.msra.mxu0 0.0
    %75 = vmatprep.subr.mxu0 0.0
    %76 = vmatpush1.msra.mxu0 0.0
    %77 = vmatprep.subr.mxu0 0.0
    %78 = vmatpush1.msra.mxu0 0.0
    %79 = vmatprep.subr.mxu0 0.0
    %80 = vmatpush1.msra.mxu0 0.0
    %81 = vmatprep.subr.mxu0 0.0
    %82 = vmatpush1.msra.mxu0 0.0
    %83 = vmatprep.subr.mxu0 0.0
    %84 = vmatpush1.msra.mxu0 0.0
    %85 = vmatprep.subr.mxu0 0.0
    %86 = vmatpush1.msra.mxu0 0.0
    %87 = vmatprep.subr.mxu0 0.0
    %88 = vmatpush1.msra.mxu0 0.0
    %89 = vmatprep.subr.mxu0 0.0
    %90 = vmatpush1.msra.mxu0 0.0
    %91 = vmatprep.subr.mxu0 0.0
    %92 = vmatpush1.msra.mxu0 0.0
    %93 = vmatprep.subr.mxu0 0.0
    %94 = vmatpush1.msra.mxu0 0.0
    %95 = vmatprep.subr.mxu0 0.0
    %96 = vmatpush1.msra.mxu0 0.0
    %97 = vmatprep.subr.mxu0 0.0
    %98 = vmatpush1.msra.mxu0 0.0
    %99 = vmatprep.subr.mxu0 0.0
    %100 = vmatpush1.msra.mxu0 0.0
    %101 = vmatprep.subr.mxu0 0.0
    %102 = vmatpush1.msra.mxu0 0.0
    %103 = vmatprep.subr.mxu0 0.0
    %104 = vmatpush1.msra.mxu0 0.0
    %105 = vmatprep.subr.mxu0 0.0
    %106 = vmatpush1.msra.mxu0 0.0
    %107 = vmatprep.subr.mxu0 0.0
    %108 = vmatpush1.msra.mxu0 0.0
    %109 = vmatprep.subr.mxu0 0.0
    %110 = vmatpush1.msra.mxu0 0.0
    %111 = vmatprep.subr.mxu0 0.0
    %112 = vmatpush1.msra.mxu0 0.0
    %113 = vmatprep.subr.mxu0 0.0
    %114 = vmatpush1.msra.mxu0 0.0
    %115 = vmatprep.subr.mxu0 0.0
    %116 = vmatpush1.msra.mxu0 0.0
    %117 = vmatprep.subr.mxu0 0.0
    %118 = vmatpush1.msra.mxu0 0.0
    %119 = vmatprep.subr.mxu0 0.0
    %120 = vmatpush1.msra.mxu0 0.0
    %121 = vmatprep.subr.mxu0 0.0
    %122 = vmatpush1.msra.mxu0 0.0
    %123 = vmatprep.subr.mxu0 0.0
    %124 = vmatpush1.msra.mxu0 0.0
    %125 = vmatprep.subr.mxu0 0.0
    %126 = vmatpush1.msra.mxu0 0.0
    %127 = vmatprep.mubr.f32.mxu0 0.0
    %128 = vmatmul.mubr.f32.gmra.mrb[0].mxu0 %v61
    %v129 = vpop.f32.mrb[0].mxu0
    %v130 = vadd.f32 %v57, %v129
    %v131 = vpop.f32.mrb[0].mxu0
    %132 = vdwg.mxu0
    %v133 = vmul.f32 %v130, 0.01
    %v134 = vmax.f32 %v130, %v133
    %vm135 = vcmask 523264
    %v136 = vsel %vm135, %v134, 0.0
    %v137 = vrot.slane %v136, 4
    %v138 = vadd.f32 %v136, %v137
    %v139 = vrot.slane %v138, 2
    %v140 = vadd.f32 %v138, %v139
    %v141 = vrot.slane %v140, 1
    %v142 = vadd.f32 %v140, %v141
    %v143 = vmul.f32 %v142, 0.125
    %v144 = vsub.f32 %v134, %v143
    %v145 = vmul.f32 %v144, %v144
    %v146 = vsel %vm135, %v145, 0.0
    %v147 = vrot.slane %v146, 4
    %v148 = vadd.f32 %v146, %v147
    %v149 = vrot.slane %v148, 2
    %v150 = vadd.f32 %v148, %v149
    %v151 = vrot.slane %v150, 1
    %v152 = vadd.f32 %v150, %v151
    %v153 = vmul.f32 %v152, 0.125
    %v154 = vld [vmem:[%s3] sm:$0x1]
    %v155 = vadd.f32 %v153, 1e-05
    %v156 = vrsqrt.pop %v155
    %v157 = vmul.f32 %v154, %v156
    %v159 = vlaneseq
    %v160 = vshrl.u32 %v159, 7
    %v161 = vsub.s32 0, %v160
    %v162 = vrot.slane %v157, %v161
    %v164 = vmul.f32 %v144, %v162
    %v165 = vld [vmem:[%s4] sm:$0x1]
    %v167 = vlaneseq
    %v168 = vshrl.u32 %v167, 7
    %v169 = vsub.s32 0, %v168
    %v170 = vrot.slane %v165, %v169
    %v172 = vadd.f32 %v164, %v170
    %173 = vst.msk [vmem:[#allocation7] sm:$0xff] %vm135, %v172
    // Predicated region
    $region30: #{tpu_custom_call.1} parent=1 // pred_check
      _
    $region31: #{tpu_custom_call.1} parent=1 // pred_check_branch
      %175 = sbr.rel (0) target = $region33
    $region32: #{tpu_custom_call.1} parent=1 // pred_region
      %s177 = ssub.s32 128, 128
      %178 = vsyncadd [#allocation4], %s177
      %s180 = sshll.u32 [#allocation7], 4
      %s181 = int_to_ptr.vmem [resolvable:$true] %s180
      %183 = dma.vmem_to_hbm [thread:$0]  %s181, 128, %s5, [#allocation4]
    $region33: #{tpu_custom_call.1} parent=1 // pred_fallthru
      _
    // Predicated region
    $region34: #{tpu_custom_call.1} parent=1 // pred_check
      _
    $region35: #{tpu_custom_call.1} parent=1 // pred_check_branch
      %185 = sbr.rel (0) target = $region37
    $region36: #{tpu_custom_call.1} parent=1 // pred_region
      %186 = dma.done [#allocation4], 128
    $region37: #{tpu_custom_call.1} parent=1 // pred_fallthru
      _
    %187 = vsyncpa [#allocation3], 1
    %188 = vsyncpa [#allocation6], 1
    %189 = vsyncpa [#allocation4], 1

</llo_original>
